<compile_context>
chip_gen: v7x
topology: tpu7x:2x2x1
jax: 0.10.0
libtpu: 0.0.40
codegen_flags: <defaults>
</compile_context>

<pallas_src>
import functools

import jax
import jax.numpy as jnp
from jax.experimental import pallas as pl
from jax.experimental.pallas import tpu as pltpu


def _round_up(n, m):
    return ((n + m - 1) // m) * m


def _sublane_multiple(dtype):
    # f32 -> 8 rows/sublane-tile, bf16 -> 16, int8/fp8 -> 32 (packed rows).
    return max(8, 32 // jnp.dtype(dtype).itemsize)


def _vmem_budget():
    physical = 64 * 1024 * 1024          # conservative per-TensorCore default (v7x)
    try:
        cap = getattr(pltpu.get_tpu_info(), "vmem_capacity_bytes", None)
        if cap:
            # TODO(synk): confirm get_tpu_info reports per-TensorCore VMEM on
            # v7x (64 MiB/TC, 2 TC/chip); cap at 128 MiB so a per-chip value
            # cannot overshoot the scoped limit.
            physical = min(int(cap), 128 * 1024 * 1024)
    except Exception:
        pass
    block_budget = physical // 2         # budget for pipeline buffers
    vmem_limit = min((physical * 3) // 4, 100 * 1024 * 1024)
    return int(block_budget), int(vmem_limit)


def _choose_tiles(rows, k, hp, itemsize, block_budget, sub):
    """Pick (row_tile, k_tile). k_tile == k means no K-reduction axis."""

    def max_tm(tk, w_bufs):
        # W tile(s) + params (fixed) vs. double-buffered x/out rows + f32
        # accumulator + epilogue temporaries (per row).
        fixed = w_bufs * tk * hp * itemsize + 3 * hp * 4
        per_row = 2 * (tk + hp) * itemsize + 6 * hp * 4
        avail = block_budget - fixed
        if avail <= 0:
            return 0
        return (avail // per_row) // sub * sub

    def shape_tm(tm):
        tm = max(tm, sub)
        if tm >= rows:
            return rows                   # full-extent block: always legal
        tm = min(tm, 1024)
        # Keep a few row steps (pipelining / both v7x TCs) only when every
        # step still keeps >= ~512 rows — the roofline knee on v5e/v6e.
        if rows >= 4 * 512:
            tm = min(tm, _round_up(-(-rows // 4), sub))
        elif rows >= 2 * 512:
            tm = min(tm, _round_up(-(-rows // 2), sub))
        return tm

    target = min(_round_up(rows, sub), 256)

    tm = max_tm(k, 1)                     # whole K resident, W single-buffered
    if tm >= target:
        return shape_tm(tm), k

    # Whole-K residency starves the row tile (large input_size on v7x's
    # 64 MiB VMEM): fall back to a K-reduction axis (tk multiple of 128).
    best_tm, best_tk = tm, k
    for tk in (2048, 1024, 512, 256, 128):
        if tk >= k:
            continue
        tm2 = max_tm(tk, 2)               # W double-buffered across k steps
        if tm2 > best_tm:
            best_tm, best_tk = tm2, tk
            if tm2 >= target:
                break
    return shape_tm(best_tm), best_tk


def _mlp_kernel(x_ref, w_ref, p_ref, o_ref, acc_ref, *, eps, inv_h, h_real, h_pad):
    """One (row-tile, k-tile) grid step.

    grid = (row_tiles, k_tiles); k is the reduction axis ("arbitrary").
    acc_ref is an f32 accumulator living across the k axis; the LayerNorm +
    ReLU epilogue runs at the last k step while the tile is still in VMEM.
    """
    @pl.when(pl.program_id(1) == 0)
    def _():
        acc_ref[...] = jnp.zeros_like(acc_ref)

    # MXU matmul in the operands' native dtype, f32 accumulate (no pre-cast).
    acc_ref[...] += jnp.dot(x_ref[...], w_ref[...],
                            preferred_element_type=jnp.float32)

    @pl.when(pl.program_id(1) == pl.num_programs(1) - 1)
    def _():
        p = p_ref[...].astype(jnp.float32)       # (3, Hp): bias / gamma / beta
        h = acc_ref[...] + p[0:1, :]             # Linear output; padded lanes = 0

        # Two-pass LayerNorm over the real hidden lanes (inv_h = 1/H_real).
        u = jnp.sum(h, axis=-1, keepdims=True) * inv_h
        d = h - u
        if h_pad != h_real:                      # keep padded lanes out of the variance
            lane = jax.lax.broadcasted_iota(jnp.int32, h.shape, dimension=1)
            d = jnp.where(lane < h_real, d, 0.0)
        var = jnp.sum(d * d, axis=-1, keepdims=True) * inv_h

        # Fused affine: y = h*s + t == gamma*(h-u)*rsqrt(var+eps) + beta.
        s = p[1:2, :] * jax.lax.rsqrt(var + eps)
        t = p[2:3, :] - u * s
        o_ref[...] = jnp.maximum(h * s + t, 0.0).astype(o_ref.dtype)   # ReLU


@functools.partial(jax.jit, static_argnames=("eps", "row_tile"))
def mlp_forward(x, lin_w, lin_b, ln_w, ln_b, eps=1e-05, row_tile=None):
    """Fused Linear -> LayerNorm -> ReLU matching MLP.forward.

    lin_w is in PyTorch nn.Linear layout (hidden_size, input_size).
    """
    if x.ndim > 2:
        x = x.reshape(x.shape[0], -1)            # hidden_states.view(B, -1)
    rows, k = x.shape
    hidden = lin_w.shape[0]
    hp = _round_up(max(hidden, 128), 128)        # lane-dense output width

    # Weight as (K, Hp): hidden on the lane axis; padded output columns are 0,
    # so padded h lanes are exactly 0 and LN statistics stay those of H_real.
    w2 = jnp.swapaxes(lin_w, 0, 1)
    params = jnp.stack([lin_b, ln_w, ln_b]).astype(jnp.float32)   # (3, H)
    if hp != hidden:
        w2 = jnp.pad(w2, ((0, 0), (0, hp - hidden)))
        params = jnp.pad(params, ((0, 0), (0, hp - hidden)))

    itemsize = jnp.dtype(x.dtype).itemsize
    sub = _sublane_multiple(x.dtype)
    block_budget, vmem_limit = _vmem_budget()
    tm, tk = _choose_tiles(rows, k, hp, itemsize, block_budget, sub)
    if row_tile is not None:
        tm = int(row_tile)

    nk = pl.cdiv(k, tk)
    if nk > 1:
        kp = nk * tk
        if kp != k:
            # Zero-pad the reduction axis: ragged K tiles must not feed
            # undefined data into the accumulator (zeros contribute nothing).
            x = jnp.pad(x, ((0, 0), (0, kp - k)))
            w2 = jnp.pad(w2, ((0, kp - k), (0, 0)))
    else:
        tk = k                                   # whole-K (full-extent) block
        kp = k

    grid = (pl.cdiv(rows, tm), nk)               # ragged row tail handled by Pallas

    kernel = functools.partial(_mlp_kernel, eps=float(eps), inv_h=1.0 / hidden,
                               h_real=hidden, h_pad=hp)

    cost = pl.CostEstimate(
        flops=int(2 * rows * kp * hp + 8 * rows * hp),
        transcendentals=int(rows),
        bytes_accessed=int(
            rows * kp * itemsize
            + kp * hp * itemsize * (grid[0] if nk > 1 else 1)
            + rows * hp * itemsize + 3 * hp * 4),
    )

    # Grid-invariant weight (no K axis): a single pipeline buffer is enough
    # and keeps the row-tile VMEM budget large.
    w_kwargs = dict(pipeline_mode=pl.Buffered(1)) if nk == 1 else {}

    out = pl.pallas_call(
        kernel,
        out_shape=jax.ShapeDtypeStruct((rows, hp), x.dtype),
        grid_spec=pltpu.PrefetchScalarGridSpec(
            num_scalar_prefetch=0,
            grid=grid,
            in_specs=[
                pl.BlockSpec((tm, tk), lambda i, kk: (i, kk)),
                pl.BlockSpec((tk, hp), lambda i, kk: (kk, 0), **w_kwargs),
                pl.BlockSpec((3, hp), lambda i, kk: (0, 0),
                             pipeline_mode=pl.Buffered(1)),
            ],
            out_specs=pl.BlockSpec((tm, hp), lambda i, kk: (i, 0)),
            scratch_shapes=[pltpu.VMEM((tm, hp), jnp.float32)],
        ),
        compiler_params=pltpu.CompilerParams(
            dimension_semantics=("parallel", "arbitrary"),
            vmem_limit_bytes=vmem_limit,
        ),
        cost_estimate=cost,
    )(x, w2, params)

    return out if hp == hidden else out[:, :hidden]


if __name__ == "__main__":
    # MLP(input_size=64, hidden_size=32); input (batch=2, seq=8, feat=8) is
    # flattened to (2, 64) by the module's `.view(batch, -1)`.
    batch, seq, feat, hidden = 2, 8, 8, 32
    input_size = seq * feat
    eps = 1e-05

    key = jax.random.PRNGKey(0)
    kx, kw, kb = jax.random.split(key, 3)
    # Round x / W to bf16-representable values (kept in f32) so the in-kernel
    # MXU matmul and the XLA reference matmul agree regardless of the default
    # matmul precision / pass decomposition.
    x = jax.random.normal(kx, (batch, seq, feat), dtype=jnp.float32)
    x = x.astype(jnp.bfloat16).astype(jnp.float32)
    lin_w = (jax.random.normal(kw, (hidden, input_size), dtype=jnp.float32)
             / jnp.sqrt(float(input_size)))
    lin_w = lin_w.astype(jnp.bfloat16).astype(jnp.float32)
    lin_b = 0.1 * jax.random.normal(kb, (hidden,), dtype=jnp.float32)
    # LayerNorm parameters as initialized by the module (ones / zeros).
    ln_w = jnp.ones((hidden,), dtype=jnp.float32)
    ln_b = jnp.zeros((hidden,), dtype=jnp.float32)

    y = mlp_forward(x, lin_w, lin_b, ln_w, ln_b, eps=eps)
    y = jax.block_until_ready(y)

    # Pure-JAX reference of the same forward pass.
    x2 = x.reshape(batch, -1)
    h = x2 @ lin_w.T + lin_b
    u = jnp.mean(h, axis=-1, keepdims=True)
    s = jnp.mean((h - u) ** 2, axis=-1, keepdims=True)
    ref = ln_w * ((h - u) / jnp.sqrt(s + eps)) + ln_b
    ref = jnp.maximum(ref, 0.0)

    assert y.shape == ref.shape
    assert jnp.allclose(y, ref, atol=1e-4, rtol=1e-4), \
        float(jnp.max(jnp.abs(y - ref)))
    print("KERNEL_OK")
</pallas_src>

<mosaic_0001>
module attributes {stable_mosaic.version = 11 : i64} {
  func.func @_mlp_kernel(%arg0: i32, %arg1: i32, %arg2: memref<2x64xf32, #tpu.memory_space<vmem>>, %arg3: memref<64x128xf32, #tpu.memory_space<vmem>>, %arg4: memref<3x128xf32, #tpu.memory_space<vmem>>, %arg5: memref<2x128xf32, #tpu.memory_space<vmem>>, %arg6: memref<2x128xf32, #tpu.memory_space<vmem>>) attributes {dimension_semantics = [#tpu.dimension_semantics<parallel>, #tpu.dimension_semantics<arbitrary>], iteration_bounds = array<i64: 1, 1>, scalar_prefetch = 0 : i64, scratch_operands = 1 : i64, tpu.core_type = #tpu.core_type<tc>, window_params = [{transform_indices = @transform_0, window_bounds = array<i64: 2, 64>}, {pipeline_mode = #tpu.pipeline_mode<synchronous>, transform_indices = @transform_1, window_bounds = array<i64: 64, 128>}, {pipeline_mode = #tpu.pipeline_mode<synchronous>, transform_indices = @transform_2, window_bounds = array<i64: 3, 128>}, {transform_indices = @transform_3, window_bounds = array<i64: 2, 128>}]} {
    %c0_i32 = arith.constant 0 : i32
    %0 = arith.cmpi eq, %arg1, %c0_i32 : i32
    %1 = arith.extui %0 : i1 to i32
    %c0_i32_0 = arith.constant 0 : i32
    %2 = arith.cmpi ne, %1, %c0_i32_0 : i32
    scf.if %2 {
      %cst_10 = arith.constant 0.000000e+00 : f32
      %12 = vector.broadcast %cst_10 : f32 to vector<2x128xf32>
      %c0_11 = arith.constant 0 : index
      %c0_12 = arith.constant 0 : index
      %13 = vector.load %arg6[%c0_11, %c0_12] : memref<2x128xf32, #tpu.memory_space<vmem>>, vector<2x128xf32>
      tpu.vector_store %arg6[%c0_11, %c0_12], %12 {strides = array<i32>} : memref<2x128xf32, #tpu.memory_space<vmem>>, vector<2x128xf32>,
    } else {
    }
    %c0 = arith.constant 0 : index
    %c0_1 = arith.constant 0 : index
    %3 = vector.load %arg6[%c0, %c0_1] : memref<2x128xf32, #tpu.memory_space<vmem>>, vector<2x128xf32>
    %c0_2 = arith.constant 0 : index
    %c0_3 = arith.constant 0 : index
    %4 = vector.load %arg2[%c0_2, %c0_3] : memref<2x64xf32, #tpu.memory_space<vmem>>, vector<2x64xf32>
    %c0_4 = arith.constant 0 : index
    %c0_5 = arith.constant 0 : index
    %5 = vector.load %arg3[%c0_4, %c0_5] : memref<64x128xf32, #tpu.memory_space<vmem>>, vector<64x128xf32>
    %cst = arith.constant dense<0.000000e+00> : vector<2x128xf32>
    %6 = tpu.matmul %4, %5, %cst {dimension_numbers = #tpu.dot_dimension_numbers<[1], [0], [0], [1], [0, 0, 1, 1], [], []>} : vector<2x64xf32>, vector<64x128xf32>, vector<2x128xf32> -> vector<2x128xf32>
    %7 = arith.addf %3, %6 : vector<2x128xf32>
    %c0_6 = arith.constant 0 : index
    %c0_7 = arith.constant 0 : index
    %8 = vector.load %arg6[%c0_6, %c0_7] : memref<2x128xf32, #tpu.memory_space<vmem>>, vector<2x128xf32>
    tpu.vector_store %arg6[%c0_6, %c0_7], %7 {strides = array<i32>} : memref<2x128xf32, #tpu.memory_space<vmem>>, vector<2x128xf32>,
    %c0_i32_8 = arith.constant 0 : i32
    %9 = arith.cmpi eq, %arg1, %c0_i32_8 : i32
    %10 = arith.extui %9 : i1 to i32
    %c0_i32_9 = arith.constant 0 : i32
    %11 = arith.cmpi ne, %10, %c0_i32_9 : i32
    scf.if %11 {
      %c0_10 = arith.constant 0 : index
      %c0_11 = arith.constant 0 : index
      %12 = vector.load %arg4[%c0_10, %c0_11] : memref<3x128xf32, #tpu.memory_space<vmem>>, vector<3x128xf32>
      %c0_12 = arith.constant 0 : index
      %c0_13 = arith.constant 0 : index
      %13 = vector.load %arg6[%c0_12, %c0_13] : memref<2x128xf32, #tpu.memory_space<vmem>>, vector<2x128xf32>
      %14 = vector.extract_strided_slice %12 {offsets = [0, 0], sizes = [1, 128], strides = [1, 1]} : vector<3x128xf32> to vector<1x128xf32>
      %15 = vector.broadcast %14 : vector<1x128xf32> to vector<2x128xf32>
      %16 = arith.addf %13, %15 : vector<2x128xf32>
      %cst_14 = arith.constant dense<0.000000e+00> : vector<2xf32>
      %17 = vector.multi_reduction <add>, %16, %cst_14 [1] : vector<2x128xf32> to vector<2xf32>
      %18 = vector.shape_cast %17 : vector<2xf32> to vector<2x1xf32>
      %cst_15 = arith.constant 3.125000e-02 : f32
      %19 = vector.broadcast %cst_15 : f32 to vector<2x1xf32>
      %20 = arith.mulf %18, %19 : vector<2x1xf32>
      %21 = vector.broadcast %20 : vector<2x1xf32> to vector<2x128xf32>
      %22 = arith.subf %16, %21 : vector<2x128xf32>
      %23 = tpu.iota {dimensions = array<i32: 1>} : vector<2x128xi32>
      %c32_i32 = arith.constant 32 : i32
      %24 = vector.broadcast %c32_i32 : i32 to vector<2x128xi32>
      %25 = arith.cmpi slt, %23, %24 : vector<2x128xi32>
      %cst_16 = arith.constant 0.000000e+00 : f32
      %26 = vector.broadcast %cst_16 : f32 to vector<2x128xf32>
      %27 = arith.select %25, %22, %26 : vector<2x128xi1>, vector<2x128xf32>
      %28 = arith.mulf %27, %27 : vector<2x128xf32>
      %cst_17 = arith.constant dense<0.000000e+00> : vector<2xf32>
      %29 = vector.multi_reduction <add>, %28, %cst_17 [1] : vector<2x128xf32> to vector<2xf32>
      %30 = vector.shape_cast %29 : vector<2xf32> to vector<2x1xf32>
      %cst_18 = arith.constant 3.125000e-02 : f32
      %31 = vector.broadcast %cst_18 : f32 to vector<2x1xf32>
      %32 = arith.mulf %30, %31 : vector<2x1xf32>
      %33 = vector.extract_strided_slice %12 {offsets = [1, 0], sizes = [1, 128], strides = [1, 1]} : vector<3x128xf32> to vector<1x128xf32>
      %cst_19 = arith.constant 9.99999974E-6 : f32
      %34 = vector.broadcast %cst_19 : f32 to vector<2x1xf32>
      %35 = arith.addf %32, %34 : vector<2x1xf32>
      %36 = math.rsqrt %35 : vector<2x1xf32>
      %37 = vector.broadcast %33 : vector<1x128xf32> to vector<2x128xf32>
      %38 = vector.broadcast %36 : vector<2x1xf32> to vector<2x128xf32>
      %39 = arith.mulf %37, %38 : vector<2x128xf32>
      %40 = vector.extract_strided_slice %12 {offsets = [2, 0], sizes = [1, 128], strides = [1, 1]} : vector<3x128xf32> to vector<1x128xf32>
      %41 = vector.broadcast %20 : vector<2x1xf32> to vector<2x128xf32>
      %42 = arith.mulf %41, %39 : vector<2x128xf32>
      %43 = vector.broadcast %40 : vector<1x128xf32> to vector<2x128xf32>
      %44 = arith.subf %43, %42 : vector<2x128xf32>
      %45 = arith.mulf %16, %39 : vector<2x128xf32>
      %46 = arith.addf %45, %44 : vector<2x128xf32>
      %cst_20 = arith.constant 0.000000e+00 : f32
      %47 = vector.broadcast %cst_20 : f32 to vector<2x128xf32>
      %48 = arith.maximumf %46, %47 : vector<2x128xf32>
      %c0_21 = arith.constant 0 : index
      %c0_22 = arith.constant 0 : index
      %49 = vector.load %arg5[%c0_21, %c0_22] : memref<2x128xf32, #tpu.memory_space<vmem>>, vector<2x128xf32>
      tpu.vector_store %arg5[%c0_21, %c0_22], %48 {strides = array<i32>} : memref<2x128xf32, #tpu.memory_space<vmem>>, vector<2x128xf32>,
    } else {
    }
    return
  }
  func.func @transform_0(%arg0: i32, %arg1: i32) -> (i32, i32) {
    %c0_i32 = arith.constant 0 : i32
    return %arg0, %arg1 : i32, i32
  }
  func.func @transform_1(%arg0: i32, %arg1: i32) -> (i32, i32) {
    %c0_i32 = arith.constant 0 : i32
    %c0_i32_0 = arith.constant 0 : i32
    return %arg1, %c0_i32 : i32, i32
  }
  func.func @transform_2(%arg0: i32, %arg1: i32) -> (i32, i32) {
    %c0_i32 = arith.constant 0 : i32
    %c0_i32_0 = arith.constant 0 : i32
    %c0_i32_1 = arith.constant 0 : i32
    return %c0_i32, %c0_i32_0 : i32, i32
  }
  func.func @transform_3(%arg0: i32, %arg1: i32) -> (i32, i32) {
    %c0_i32 = arith.constant 0 : i32
    %c0_i32_0 = arith.constant 0 : i32
    return %arg0, %c0_i32 : i32, i32
  }
}

</mosaic_0001>

<llo_original>
// kernel: mlp_forward.1
$region0: #{mlp_forward.1}
  #allocation0 [shape = 'u32[]', space=smem, size = 0x4, offset = 0x4, fixed_abs, tag = 'smem constant byte address 0x4 - core index']
  #allocation1 [shape = 'u32[144,128]{1,0:T(1,128)}', space=vmem, size = 0x12000, scoped, tag = 'internal scratch']
  #allocation2 [shape = 'f32[2,128]{1,0:T(2,128)}', space=vmem, size = 0x400, scoped, tag = 'scratch operand']
  %s0 = inlined_call_operand.vmem [shape: f32[2,64], index: 0, kind: input, shape index: {}]
  %s1 = inlined_call_operand.vmem [shape: f32[64,128], index: 1, kind: input, shape index: {}]
  %s2 = inlined_call_operand.vmem [shape: f32[3,128], index: 2, kind: input, shape index: {}]
  %s3 = inlined_call_operand.hbm [shape: f32[2,128], index: 3, kind: output, shape index: {}]
  %s4 = sld [smem:[#allocation0]]
  $region30: #{mlp_forward.1} parent=0
    _
  %s6 = ssub.s32 1, %s4
  %s7 = scalar_select 0, %s6, %s4
  $region1: #{mlp_forward.1} parent=0
    #allocation3 [shape = 'u8[1024]{0}', space=vmem, size = 0x400, scoped, tag = 'output window, operand 0, single buffered']
    #allocation4 [shape = 's32[1]{0}', space=sflag, size = 0x4, scoped, tag = 'scoped memory for mlp_forward.1']
    %8 = vsyncpa [#allocation4], 0
    // Predicated region
    $region2: #{mlp_forward.1} parent=1 // pred_check
      _
    $region3: #{mlp_forward.1} parent=1 // pred_check_branch
      %10 = sbr.rel (0) target = $region5
    $region4: #{mlp_forward.1} parent=1 // pred_region
      _
    $region5: #{mlp_forward.1} parent=1 // pred_fallthru
      _
    // Predicated region
    $region6: #{mlp_forward.1} parent=1 // pred_check
      _
    $region7: #{mlp_forward.1} parent=1 // pred_check_branch
      %12 = sbr.rel (0) target = $region9
    $region8: #{mlp_forward.1} parent=1 // pred_region
      _
    $region9: #{mlp_forward.1} parent=1 // pred_fallthru
      _
    // Predicated region
    $region10: #{mlp_forward.1} parent=1 // pred_check
      _
    $region11: #{mlp_forward.1} parent=1 // pred_check_branch
      %14 = sbr.rel (0) target = $region13
    $region12: #{mlp_forward.1} parent=1 // pred_region
      _
    $region13: #{mlp_forward.1} parent=1 // pred_fallthru
      _
    %p15 = scmp.eq.s32.totalorder 0, 0
    // Predicated region
    $region14: #{mlp_forward.1} parent=1 // pred_check
      %p16 = pneg %p15
    $region15: #{mlp_forward.1} parent=1 // pred_check_branch
      %18 = sbr.rel (%p16) target = $region17
    $region16: #{mlp_forward.1} parent=1 // pred_region
      %19 = vst [vmem:[#allocation2] sm:$0x3] 0.0
    $region17: #{mlp_forward.1} parent=1 // pred_fallthru
      _
    %v20 = vld [vmem:[#allocation2] sm:$0x3]
    %v21 = vld [vmem:[%s0] sm:$0x3]
    %v22 = vld [vmem:[%s1] sm:$0xff]
    %v23 = vld [vmem:[%s1 + $0x8] sm:$0xff]
    %v24 = vld [vmem:[%s1 + $0x10] sm:$0xff]
    %v25 = vld [vmem:[%s1 + $0x18] sm:$0xff]
    %v26 = vld [vmem:[%s1 + $0x20] sm:$0xff]
    %v27 = vld [vmem:[%s1 + $0x28] sm:$0xff]
    %v28 = vld [vmem:[%s1 + $0x30] sm:$0xff]
    %v29 = vld [vmem:[%s1 + $0x38] sm:$0xff]
    %vm30 = vcmask 523264
    %v32 = vsel %vm30, %v21, 0
    %34 = vmatprep.subr.mxu0 0.0
    %35 = vmatpush1.msra.mxu0 %v22
    %36 = vmatprep.subr.mxu0 0.0
    %37 = vmatpush1.msra.mxu0 %v23
    %38 = vmatprep.subr.mxu0 0.0
    %39 = vmatpush1.msra.mxu0 %v24
    %40 = vmatprep.subr.mxu0 0.0
    %41 = vmatpush1.msra.mxu0 %v25
    %42 = vmatprep.subr.mxu0 0.0
    %43 = vmatpush1.msra.mxu0 %v26
    %44 = vmatprep.subr.mxu0 0.0
    %45 = vmatpush1.msra.mxu0 %v27
    %46 = vmatprep.subr.mxu0 0.0
    %47 = vmatpush1.msra.mxu0 %v28
    %48 = vmatprep.subr.mxu0 0.0
    %49 = vmatpush1.msra.mxu0 %v29
    %50 = vmatprep.subr.mxu0 0.0
    %51 = vmatpush1.msra.mxu0 0.0
    %52 = vmatprep.subr.mxu0 0.0
    %53 = vmatpush1.msra.mxu0 0.0
    %54 = vmatprep.subr.mxu0 0.0
    %55 = vmatpush1.msra.mxu0 0.0
    %56 = vmatprep.subr.mxu0 0.0
    %57 = vmatpush1.msra.mxu0 0.0
    %58 = vmatprep.subr.mxu0 0.0
    %59 = vmatpush1.msra.mxu0 0.0
    %60 = vmatprep.subr.mxu0 0.0
    %61 = vmatpush1.msra.mxu0 0.0
    %62 = vmatprep.subr.mxu0 0.0
    %63 = vmatpush1.msra.mxu0 0.0
    %64 = vmatprep.subr.mxu0 0.0
    %65 = vmatpush1.msra.mxu0 0.0
    %66 = vmatprep.subr.mxu0 0.0
    %67 = vmatpush1.msra.mxu0 0.0
    %68 = vmatprep.subr.mxu0 0.0
    %69 = vmatpush1.msra.mxu0 0.0
    %70 = vmatprep.subr.mxu0 0.0
    %71 = vmatpush1.msra.mxu0 0.0
    %72 = vmatprep.subr.mxu0 0.0
    %73 = vmatpush1.msra.mxu0 0.0
    %74 = vmatprep.subr.mxu0 0.0
    %75 = vmatpush1.msra.mxu0 0.0
    %76 = vmatprep.subr.mxu0 0.0
    %77 = vmatpush1.msra.mxu0 0.0
    %78 = vmatprep.subr.mxu0 0.0
    %79 = vmatpush1.msra.mxu0 0.0
    %80 = vmatprep.subr.mxu0 0.0
    %81 = vmatpush1.msra.mxu0 0.0
    %82 = vmatprep.subr.mxu0 0.0
    %83 = vmatpush1.msra.mxu0 0.0
    %84 = vmatprep.subr.mxu0 0.0
    %85 = vmatpush1.msra.mxu0 0.0
    %86 = vmatprep.subr.mxu0 0.0
    %87 = vmatpush1.msra.mxu0 0.0
    %88 = vmatprep.subr.mxu0 0.0
    %89 = vmatpush1.msra.mxu0 0.0
    %90 = vmatprep.subr.mxu0 0.0
    %91 = vmatpush1.msra.mxu0 0.0
    %92 = vmatprep.subr.mxu0 0.0
    %93 = vmatpush1.msra.mxu0 0.0
    %94 = vmatprep.subr.mxu0 0.0
    %95 = vmatpush1.msra.mxu0 0.0
    %96 = vmatprep.subr.mxu0 0.0
    %97 = vmatpush1.msra.mxu0 0.0
    %98 = vmatprep.mubr.f32.mxu0 0.0
    %99 = vmatmul.mubr.f32.gmra.mrb[0].mxu0 %v32
    %v100 = vpop.f32.mrb[0].mxu0
    %v101 = vadd.f32 0.0, %v100
    %v102 = vpop.f32.mrb[0].mxu0
    %103 = vdwg.mxu0
    %v104 = vadd.f32 %v20, %v101
    %105 = vst [vmem:[#allocation2] sm:$0x3] %v104
    // Predicated region
    $region18: #{mlp_forward.1} parent=1 // pred_check
      %p106 = pneg %p15
    $region19: #{mlp_forward.1} parent=1 // pred_check_branch
      %108 = sbr.rel (%p106) target = $region21
    $region20: #{mlp_forward.1} parent=1 // pred_region
      %v109 = vld [vmem:[%s2] sm:$0x7]
      %v110 = vld [vmem:[#allocation2] sm:$0x3]
      %v111 = vlaneseq
      %v112 = vshrl.u32 %v111, 7
      %v113 = vsub.s32 0, %v112
      %v114 = vrot.slane %v109, %v113
      %v115 = vadd.f32 %v110, %v114
      %vm116 = vcmask 1041408
      %v117 = vsel %vm116, %v115, 0.0
      %118 = vadd.xlane.f32.xlu0 %v117
      %v119 = vpop.xlane.xlu0 %118
      %v120 = vmul.f32 %v119, 0.03125
      %v121 = vsub.f32 %v115, %v120
      %v122 = vlaneseq
      %v123 = vand.u32 %v122, 127
      %vm124 = vcmp.lt.s32.totalorder %v123, 32
      %v125 = vsel %vm124, %v121, 0.0
      %v126 = vmul.f32 %v125, %v125
      %v127 = vsel %vm116, %v126, 0.0
      %128 = vadd.xlane.f32.xlu0 %v127
      %v129 = vpop.xlane.xlu0 %128
      %v130 = vmul.f32 %v129, 0.03125
      %v131 = vadd.f32 %v130, 1e-05
      %v132 = vrsqrt.pop %v131
      %v133 = vlaneseq
      %v134 = vshrl.u32 %v133, 7
      %v135 = vsub.s32 1, %v134
      %v136 = vrot.slane %v109, %v135
      %v137 = vmul.f32 %v136, %v132
      %v138 = vmul.f32 %v120, %v137
      %v139 = vlaneseq
      %v140 = vshrl.u32 %v139, 7
      %v141 = vsub.s32 2, %v140
      %v142 = vrot.slane %v109, %v141
      %v143 = vsub.f32 %v142, %v138
      %v144 = vmul.f32 %v115, %v137
      %v145 = vadd.f32 %v144, %v143
      %v146 = vmax.f32 %v145, 0.0
      %147 = vst [vmem:[#allocation3] sm:$0x3] %v146
    $region21: #{mlp_forward.1} parent=1 // pred_fallthru
      _
    // Predicated region
    $region22: #{mlp_forward.1} parent=1 // pred_check
      _
    $region23: #{mlp_forward.1} parent=1 // pred_check_branch
      %149 = sbr.rel (0) target = $region25
    $region24: #{mlp_forward.1} parent=1 // pred_region
      %s151 = ssub.s32 32, 32
      %152 = vsyncadd [#allocation4], %s151
      %s154 = sshll.u32 [#allocation3], 4
      %s155 = int_to_ptr.vmem [resolvable:$true] %s154
      %157 = dma.vmem_to_hbm [thread:$0]  %s155, 32, %s3, [#allocation4]
    $region25: #{mlp_forward.1} parent=1 // pred_fallthru
      _
    // Predicated region
    $region26: #{mlp_forward.1} parent=1 // pred_check
      _
    $region27: #{mlp_forward.1} parent=1 // pred_check_branch
      %159 = sbr.rel (0) target = $region29
    $region28: #{mlp_forward.1} parent=1 // pred_region
      %160 = dma.done [#allocation4], 32
    $region29: #{mlp_forward.1} parent=1 // pred_fallthru
      _
    %161 = vsyncpa [#allocation4], 1

</llo_original>
